<compile_context>
chip_gen: v6e
topology: v6e:2x2x1
jax: 0.10.0
libtpu: 0.0.40
codegen_flags: <defaults>
</compile_context>

<pallas_src>
import functools

import jax
import jax.numpy as jnp
from jax.experimental import pallas as pl
from jax.experimental.pallas import tpu as pltpu


def _round_up(a, b):
    return ((a + b - 1) // b) * b


def rf_expert_kernel(x_ref, w_ref, thr_ref, out_ref, *, inv_n_trees):
    """One batch tile of the stump-forest surrogate.

    x_ref:   (TB, S*F)   flattened inputs (sequence mean folded into w_ref)
    w_ref:   (S*F, Tp)   per-tree one-hot feature selector tiled over S, /S
    thr_ref: (1, Tp)     per-tree threshold (f32); padded trees hold +inf
    out_ref: (1, TB)     P(class 1) per row, batch on the lane axis
    """
    # mean-over-sequence + per-tree feature gather as a single MXU matmul
    feat = jnp.dot(x_ref[...], w_ref[...], preferred_element_type=jnp.float32)
    # stump votes; padded trees compare 0 against +inf -> always vote 0
    votes = (feat > thr_ref[...]).astype(jnp.float32)
    # forest probability = (#votes for class 1) / n_trees
    proba = jnp.sum(votes, axis=1, keepdims=True) * inv_n_trees   # (TB, 1)
    out_ref[...] = jnp.transpose(proba)                           # (1, TB)


def rf_expert_forward(x, sel_onehot, thresholds, n_trees=None,
                      compute_dtype=jnp.bfloat16, tile_cap=4096):
    """x: (B, S, F) f32; sel_onehot: (F, T); thresholds: (1, T) -> (B, 1) f32.

    compute_dtype: dtype of the matmul operands (bf16 default for perf; f32
    reproduces the surrogate exactly).  Accumulation/compare stay f32.
    """
    B, S, F = x.shape
    T = sel_onehot.shape[1]
    n_trees = T if n_trees is None else n_trees
    SF = S * F

    # Fold the sequence mean into the selector weights: (S*F, T), values {0, 1/S}.
    w = jnp.tile(sel_onehot, (S, 1)) * (1.0 / S)

    # Pad the tree axis to a lane-dense multiple of 128 (no further padding).
    Tp = _round_up(T, 128)
    if Tp != T:
        w = jnp.pad(w, ((0, 0), (0, Tp - T)))
        thresholds = jnp.pad(
            thresholds, ((0, 0), (0, Tp - T)), constant_values=jnp.inf)

    x2d = x.reshape(B, SF).astype(compute_dtype)
    w = w.astype(compute_dtype)               # exact in bf16 for power-of-two S
    thresholds = thresholds.astype(jnp.float32)

    # Batch tiling: pad to >=128 (lane-dense output block), pick TB <= tile_cap
    # rows but keep >=2 grid steps on big batches for v7x 2-TC sharding.
    Bp = _round_up(B, 128)
    TB = min(tile_cap, max(128, _round_up(pl.cdiv(Bp, 2), 128)))
    Bp = _round_up(Bp, TB)
    if Bp != B:
        x2d = jnp.pad(x2d, ((0, Bp - B), (0, 0)))

    kernel = functools.partial(rf_expert_kernel, inv_n_trees=1.0 / float(n_trees))
    out = pl.pallas_call(
        kernel,
        out_shape=jax.ShapeDtypeStruct((1, Bp), jnp.float32),
        grid=(Bp // TB,),
        in_specs=[
            pl.BlockSpec((TB, SF), lambda i: (i, 0)),   # only large operand: tiled
            pl.BlockSpec((SF, Tp), lambda i: (0, 0)),   # forest weights: resident
            pl.BlockSpec((1, Tp), lambda i: (0, 0)),    # thresholds: resident
        ],
        out_specs=pl.BlockSpec((1, TB), lambda i: (0, i)),
        compiler_params=pltpu.CompilerParams(
            dimension_semantics=("parallel",)),
    )(x2d, w, thresholds)

    # lane-dense (1, Bp) -> module contract (B, 1); padded rows are discarded
    # here (do not reduce over the padded Bp axis anywhere else).
    return out[0, :B].reshape(B, 1)


def surrogate_ref(x, sel_onehot, thresholds, cast_dtype=None):
    """Pure-JAX reference of the stump-forest surrogate.

    cast_dtype=None  -> exact f32 module semantics (mean -> gather -> vote).
    cast_dtype=bf16  -> same operand quantization as the bf16 kernel path.
    """
    B, S, F = x.shape
    if cast_dtype is None:
        feat = x.mean(axis=1) @ sel_onehot
    else:
        w = (jnp.tile(sel_onehot, (S, 1)) * (1.0 / S)).astype(cast_dtype)
        feat = jnp.dot(x.reshape(B, S * F).astype(cast_dtype), w,
                       preferred_element_type=jnp.float32)
    votes = (feat > thresholds).astype(jnp.float32)
    return votes.mean(axis=1, keepdims=True)


if __name__ == "__main__":
    key = jax.random.PRNGKey(0)
    k_x, k_feat, k_thr, k_x2 = jax.random.split(key, 4)

    B, S, F = 2, 8, 32          # batch, sequence (mean-reduced), features
    T = 100                     # n_estimators=100 trees

    # deterministic "input"
    x = jax.random.normal(k_x, (B, S, F), dtype=jnp.float32)

    # deterministic synthetic "forest": one feature index + threshold per tree
    feat_idx = jax.random.randint(k_feat, (T,), 0, F)
    sel_onehot = jax.nn.one_hot(feat_idx, F, dtype=jnp.float32).T      # (F, T)
    thresholds = 0.1 * jax.random.normal(k_thr, (1, T), dtype=jnp.float32)

    # --- f32 path: exact surrogate semantics ---
    out_f32 = jax.block_until_ready(
        rf_expert_forward(x, sel_onehot, thresholds, compute_dtype=jnp.float32))
    ref_f32 = surrogate_ref(x, sel_onehot, thresholds)
    assert out_f32.shape == (B, 1) and out_f32.dtype == jnp.float32
    assert jnp.allclose(out_f32, ref_f32, atol=1e-6), (out_f32, ref_f32)

    # --- bf16 path (default perf path) ---
    out_bf16 = jax.block_until_ready(rf_expert_forward(x, sel_onehot, thresholds))
    ref_bf16 = surrogate_ref(x, sel_onehot, thresholds, cast_dtype=jnp.bfloat16)
    assert out_bf16.shape == (B, 1) and out_bf16.dtype == jnp.float32
    assert jnp.allclose(out_bf16, ref_bf16, atol=1e-6), (out_bf16, ref_bf16)
    # vs exact f32 surrogate: allow a handful of borderline vote flips
    assert jnp.allclose(out_bf16, ref_f32, atol=0.05), (out_bf16, ref_f32)

    # --- larger batch: exercises batch padding and a multi-step grid ---
    B2 = 300
    x2 = jax.random.normal(k_x2, (B2, S, F), dtype=jnp.float32)
    out2 = jax.block_until_ready(
        rf_expert_forward(x2, sel_onehot, thresholds, compute_dtype=jnp.float32))
    ref2 = surrogate_ref(x2, sel_onehot, thresholds)
    assert out2.shape == (B2, 1)
    assert jnp.allclose(out2, ref2, atol=1e-6)

    print("KERNEL_OK")
</pallas_src>

<mosaic_0001>
module attributes {stable_mosaic.version = 11 : i64} {
  func.func @rf_expert_kernel(%arg0: i32, %arg1: memref<128x256xf32, #tpu.memory_space<vmem>>, %arg2: memref<256x128xf32, #tpu.memory_space<vmem>>, %arg3: memref<1x128xf32, #tpu.memory_space<vmem>>, %arg4: memref<1x128xf32, #tpu.memory_space<vmem>>) attributes {dimension_semantics = [#tpu.dimension_semantics<parallel>], iteration_bounds = array<i64: 1>, scalar_prefetch = 0 : i64, scratch_operands = 0 : i64, tpu.core_type = #tpu.core_type<tc>, window_params = [{transform_indices = @transform_0, window_bounds = array<i64: 128, 256>}, {pipeline_mode = #tpu.pipeline_mode<synchronous>, transform_indices = @transform_1, window_bounds = array<i64: 256, 128>}, {pipeline_mode = #tpu.pipeline_mode<synchronous>, transform_indices = @transform_2, window_bounds = array<i64: 1, 128>}, {transform_indices = @transform_3, window_bounds = array<i64: 1, 128>}]} {
    %c0 = arith.constant 0 : index
    %c0_0 = arith.constant 0 : index
    %0 = vector.load %arg1[%c0, %c0_0] : memref<128x256xf32, #tpu.memory_space<vmem>>, vector<128x256xf32>
    %c0_1 = arith.constant 0 : index
    %c0_2 = arith.constant 0 : index
    %1 = vector.load %arg2[%c0_1, %c0_2] : memref<256x128xf32, #tpu.memory_space<vmem>>, vector<256x128xf32>
    %cst = arith.constant dense<0.000000e+00> : vector<128x128xf32>
    %2 = tpu.matmul %0, %1, %cst {dimension_numbers = #tpu.dot_dimension_numbers<[1], [0], [0], [1], [0, 0, 1, 1], [], []>} : vector<128x256xf32>, vector<256x128xf32>, vector<128x128xf32> -> vector<128x128xf32>
    %c0_3 = arith.constant 0 : index
    %c0_4 = arith.constant 0 : index
    %3 = vector.load %arg3[%c0_3, %c0_4] : memref<1x128xf32, #tpu.memory_space<vmem>>, vector<1x128xf32>
    %4 = vector.broadcast %3 : vector<1x128xf32> to vector<128x128xf32>
    %5 = arith.cmpf ogt, %2, %4 : vector<128x128xf32>
    %6 = arith.extui %5 : vector<128x128xi1> to vector<128x128xi32>
    %7 = arith.sitofp %6 : vector<128x128xi32> to vector<128x128xf32>
    %cst_5 = arith.constant dense<0.000000e+00> : vector<128xf32>
    %8 = vector.multi_reduction <add>, %7, %cst_5 [1] : vector<128x128xf32> to vector<128xf32>
    %9 = vector.shape_cast %8 : vector<128xf32> to vector<128x1xf32>
    %cst_6 = arith.constant 0.00999999977 : f32
    %10 = vector.broadcast %cst_6 : f32 to vector<128x1xf32>
    %11 = arith.mulf %9, %10 : vector<128x1xf32>
    %12 = tpu.transpose %11, [1, 0] : vector<128x1xf32> -> vector<1x128xf32>
    %c0_7 = arith.constant 0 : index
    %c0_8 = arith.constant 0 : index
    %13 = vector.load %arg4[%c0_7, %c0_8] : memref<1x128xf32, #tpu.memory_space<vmem>>, vector<1x128xf32>
    tpu.vector_store %arg4[%c0_7, %c0_8], %12 {strides = array<i32>} : memref<1x128xf32, #tpu.memory_space<vmem>>, vector<1x128xf32>,
    return
  }
  func.func @transform_0(%arg0: i32) -> (i32, i32) {
    %c0_i32 = arith.constant 0 : i32
    %c0_i32_0 = arith.constant 0 : i32
    return %arg0, %c0_i32 : i32, i32
  }
  func.func @transform_1(%arg0: i32) -> (i32, i32) {
    %c0_i32 = arith.constant 0 : i32
    %c0_i32_0 = arith.constant 0 : i32
    %c0_i32_1 = arith.constant 0 : i32
    return %c0_i32, %c0_i32_0 : i32, i32
  }
  func.func @transform_2(%arg0: i32) -> (i32, i32) {
    %c0_i32 = arith.constant 0 : i32
    %c0_i32_0 = arith.constant 0 : i32
    %c0_i32_1 = arith.constant 0 : i32
    return %c0_i32, %c0_i32_0 : i32, i32
  }
  func.func @transform_3(%arg0: i32) -> (i32, i32) {
    %c0_i32 = arith.constant 0 : i32
    %c0_i32_0 = arith.constant 0 : i32
    return %c0_i32, %arg0 : i32, i32
  }
}

</mosaic_0001>

<llo_original>
// kernel: tpu_custom_call.1
$region0: #{tpu_custom_call.1}
  #allocation0 [shape = 'u32[]', space=smem, size = 0x4, offset = 0x4, fixed_abs, tag = 'smem constant byte address 0x4 - core index']
  #allocation1 [shape = 'u32[144,128]{1,0:T(1,128)}', space=vmem, size = 0x12000, scoped, tag = 'internal scratch']
  %s0 = inlined_call_operand.hbm [shape: f32[128,256], index: 0, kind: input, shape index: {}]
  %s1 = inlined_call_operand.hbm [shape: f32[256,128], index: 1, kind: input, shape index: {}]
  %s2 = inlined_call_operand.vmem [shape: f32[1,128], index: 2, kind: input, shape index: {}]
  %s3 = inlined_call_operand.hbm [shape: f32[1,128], index: 3, kind: output, shape index: {}]
  %s4 = sld [smem:[#allocation0]]
  $region30: #{tpu_custom_call.1} parent=0
    _
  %s6 = ssub.s32 1, %s4
  %s7 = scalar_select 0, %s6, %s4
  $region1: #{tpu_custom_call.1} parent=0
    #allocation2 [shape = 'u8[131072]{0}', space=vmem, size = 0x20000, scoped, tag = 'input window, operand 0, single buffered']
    #allocation3 [shape = 's32[1]{0}', space=sflag, size = 0x4, scoped, tag = 'scoped memory for tpu_custom_call.1']
    #allocation4 [shape = 's32[1]{0}', space=sflag, size = 0x4, scoped, tag = 'scoped memory for tpu_custom_call.1']
    #allocation5 [shape = 'u8[131072]{0}', space=vmem, size = 0x20000, scoped, tag = 'input window, operand 1, single buffered']
    #allocation6 [shape = 's32[1]{0}', space=sflag, size = 0x4, scoped, tag = 'scoped memory for tpu_custom_call.1']
    #allocation7 [shape = 'u8[512]{0}', space=vmem, size = 0x400, scoped, tag = 'output window, operand 0, single buffered']
    %8 = vsyncpa [#allocation3], 0
    %9 = vsyncpa [#allocation6], 0
    %10 = vsyncpa [#allocation4], 0
    // Predicated region
    $region2: #{tpu_custom_call.1} parent=1 // pred_check
      _
    $region3: #{tpu_custom_call.1} parent=1 // pred_check_branch
      %12 = sbr.rel (0) target = $region5
    $region4: #{tpu_custom_call.1} parent=1 // pred_region
      %s14 = ssub.s32 4096, 4096
      %15 = vsyncadd [#allocation3], %s14
      %s16 = sshll.u32 [#allocation2], 4
      %s17 = int_to_ptr.vmem [resolvable:$true] %s16
      %22 = dma.hbm_to_vmem [thread:$0]  %s0, 4096, %s17, [#allocation3], 256, 256, 16
    $region5: #{tpu_custom_call.1} parent=1 // pred_fallthru
      _
    // Predicated region
    $region6: #{tpu_custom_call.1} parent=1 // pred_check
      _
    $region7: #{tpu_custom_call.1} parent=1 // pred_check_branch
      %24 = sbr.rel (0) target = $region9
    $region8: #{tpu_custom_call.1} parent=1 // pred_region
      %s26 = ssub.s32 4096, 4096
      %27 = vsyncadd [#allocation6], %s26
      %s28 = sshll.u32 [#allocation5], 4
      %s29 = int_to_ptr.vmem [resolvable:$true] %s28
      %34 = dma.hbm_to_vmem [thread:$0]  %s1, 4096, %s29, [#allocation6], 128, 128, 8
    $region9: #{tpu_custom_call.1} parent=1 // pred_fallthru
      _
    // Predicated region
    $region10: #{tpu_custom_call.1} parent=1 // pred_check
      _
    $region11: #{tpu_custom_call.1} parent=1 // pred_check_branch
      %36 = sbr.rel (0) target = $region13
    $region12: #{tpu_custom_call.1} parent=1 // pred_region
      _
    $region13: #{tpu_custom_call.1} parent=1 // pred_fallthru
      _
    // Predicated region
    $region14: #{tpu_custom_call.1} parent=1 // pred_check
      _
    $region15: #{tpu_custom_call.1} parent=1 // pred_check_branch
      %38 = sbr.rel (0) target = $region17
    $region16: #{tpu_custom_call.1} parent=1 // pred_region
      %39 = dma.done [#allocation3], 4096
    $region17: #{tpu_custom_call.1} parent=1 // pred_fallthru
      _
    // Predicated region
    $region18: #{tpu_custom_call.1} parent=1 // pred_check
      _
    $region19: #{tpu_custom_call.1} parent=1 // pred_check_branch
      %41 = sbr.rel (0) target = $region21
    $region20: #{tpu_custom_call.1} parent=1 // pred_region
      %42 = dma.done [#allocation6], 4096
    $region21: #{tpu_custom_call.1} parent=1 // pred_fallthru
      _
    %v43 = vld [vmem:[#allocation2] sm:$0xff]
    %v44 = vld [vmem:[#allocation2 + $0x8] sm:$0xff]
    %v45 = vld [vmem:[#allocation2 + $0x10] sm:$0xff]
    %v46 = vld [vmem:[#allocation2 + $0x18] sm:$0xff]
    %v47 = vld [vmem:[#allocation2 + $0x20] sm:$0xff]
    %v48 = vld [vmem:[#allocation2 + $0x28] sm:$0xff]
    %v49 = vld [vmem:[#allocation2 + $0x30] sm:$0xff]
    %v50 = vld [vmem:[#allocation2 + $0x38] sm:$0xff]
    %v51 = vld [vmem:[#allocation2 + $0x40] sm:$0xff]
    %v52 = vld [vmem:[#allocation2 + $0x48] sm:$0xff]
    %v53 = vld [vmem:[#allocation2 + $0x50] sm:$0xff]
    %v54 = vld [vmem:[#allocation2 + $0x58] sm:$0xff]
    %v55 = vld [vmem:[#allocation2 + $0x60] sm:$0xff]
    %v56 = vld [vmem:[#allocation2 + $0x68] sm:$0xff]
    %v57 = vld [vmem:[#allocation2 + $0x70] sm:$0xff]
    %v58 = vld [vmem:[#allocation2 + $0x78] sm:$0xff]
    %v59 = vld [vmem:[#allocation2 + $0x80] sm:$0xff]
    %v60 = vld [vmem:[#allocation2 + $0x88] sm:$0xff]
    %v61 = vld [vmem:[#allocation2 + $0x90] sm:$0xff]
    %v62 = vld [vmem:[#allocation2 + $0x98] sm:$0xff]
    %v63 = vld [vmem:[#allocation2 + $0xa0] sm:$0xff]
    %v64 = vld [vmem:[#allocation2 + $0xa8] sm:$0xff]
    %v65 = vld [vmem:[#allocation2 + $0xb0] sm:$0xff]
    %v66 = vld [vmem:[#allocation2 + $0xb8] sm:$0xff]
    %v67 = vld [vmem:[#allocation2 + $0xc0] sm:$0xff]
    %v68 = vld [vmem:[#allocation2 + $0xc8] sm:$0xff]
    %v69 = vld [vmem:[#allocation2 + $0xd0] sm:$0xff]
    %v70 = vld [vmem:[#allocation2 + $0xd8] sm:$0xff]
    %v71 = vld [vmem:[#allocation2 + $0xe0] sm:$0xff]
    %v72 = vld [vmem:[#allocation2 + $0xe8] sm:$0xff]
    %v73 = vld [vmem:[#allocation2 + $0xf0] sm:$0xff]
    %v74 = vld [vmem:[#allocation2 + $0xf8] sm:$0xff]
    %v75 = vld [vmem:[#allocation5] sm:$0xff]
    %v76 = vld [vmem:[#allocation5 + $0x8] sm:$0xff]
    %v77 = vld [vmem:[#allocation5 + $0x10] sm:$0xff]
    %v78 = vld [vmem:[#allocation5 + $0x18] sm:$0xff]
    %v79 = vld [vmem:[#allocation5 + $0x20] sm:$0xff]
    %v80 = vld [vmem:[#allocation5 + $0x28] sm:$0xff]
    %v81 = vld [vmem:[#allocation5 + $0x30] sm:$0xff]
    %v82 = vld [vmem:[#allocation5 + $0x38] sm:$0xff]
    %v83 = vld [vmem:[#allocation5 + $0x40] sm:$0xff]
    %v84 = vld [vmem:[#allocation5 + $0x48] sm:$0xff]
    %v85 = vld [vmem:[#allocation5 + $0x50] sm:$0xff]
    %v86 = vld [vmem:[#allocation5 + $0x58] sm:$0xff]
    %v87 = vld [vmem:[#allocation5 + $0x60] sm:$0xff]
    %v88 = vld [vmem:[#allocation5 + $0x68] sm:$0xff]
    %v89 = vld [vmem:[#allocation5 + $0x70] sm:$0xff]
    %v90 = vld [vmem:[#allocation5 + $0x78] sm:$0xff]
    %v91 = vld [vmem:[#allocation5 + $0x80] sm:$0xff]
    %v92 = vld [vmem:[#allocation5 + $0x88] sm:$0xff]
    %v93 = vld [vmem:[#allocation5 + $0x90] sm:$0xff]
    %v94 = vld [vmem:[#allocation5 + $0x98] sm:$0xff]
    %v95 = vld [vmem:[#allocation5 + $0xa0] sm:$0xff]
    %v96 = vld [vmem:[#allocation5 + $0xa8] sm:$0xff]
    %v97 = vld [vmem:[#allocation5 + $0xb0] sm:$0xff]
    %v98 = vld [vmem:[#allocation5 + $0xb8] sm:$0xff]
    %v99 = vld [vmem:[#allocation5 + $0xc0] sm:$0xff]
    %v100 = vld [vmem:[#allocation5 + $0xc8] sm:$0xff]
    %v101 = vld [vmem:[#allocation5 + $0xd0] sm:$0xff]
    %v102 = vld [vmem:[#allocation5 + $0xd8] sm:$0xff]
    %v103 = vld [vmem:[#allocation5 + $0xe0] sm:$0xff]
    %v104 = vld [vmem:[#allocation5 + $0xe8] sm:$0xff]
    %v105 = vld [vmem:[#allocation5 + $0xf0] sm:$0xff]
    %v106 = vld [vmem:[#allocation5 + $0xf8] sm:$0xff]
    %107 = vmatprep.subr.mxu0 0.0
    %108 = vmatpush1.msra.mxu0 %v90
    %109 = vmatprep.subr.mxu0 0.0
    %110 = vmatpush1.msra.mxu0 %v89
    %111 = vmatprep.subr.mxu0 0.0
    %112 = vmatpush1.msra.mxu0 %v88
    %113 = vmatprep.subr.mxu0 0.0
    %114 = vmatpush1.msra.mxu0 %v87
    %115 = vmatprep.subr.mxu0 0.0
    %116 = vmatpush1.msra.mxu0 %v86
    %117 = vmatprep.subr.mxu0 0.0
    %118 = vmatpush1.msra.mxu0 %v85
    %119 = vmatprep.subr.mxu0 0.0
    %120 = vmatpush1.msra.mxu0 %v84
    %121 = vmatprep.subr.mxu0 0.0
    %122 = vmatpush1.msra.mxu0 %v83
    %123 = vmatprep.subr.mxu0 0.0
    %124 = vmatpush1.msra.mxu0 %v82
    %125 = vmatprep.subr.mxu0 0.0
    %126 = vmatpush1.msra.mxu0 %v81
    %127 = vmatprep.subr.mxu0 0.0
    %128 = vmatpush1.msra.mxu0 %v80
    %129 = vmatprep.subr.mxu0 0.0
    %130 = vmatpush1.msra.mxu0 %v79
    %131 = vmatprep.subr.mxu0 0.0
    %132 = vmatpush1.msra.mxu0 %v78
    %133 = vmatprep.subr.mxu0 0.0
    %134 = vmatpush1.msra.mxu0 %v77
    %135 = vmatprep.subr.mxu0 0.0
    %136 = vmatpush1.msra.mxu0 %v76
    %137 = vmatprep.subr.mxu0 0.0
    %138 = vmatpush1.msra.mxu0 %v75
    %139 = vmatprep.subr.mxu0 0.0
    %140 = vmatpush2.msra.mxu0 %v106
    %141 = vmatprep.subr.mxu0 0.0
    %142 = vmatpush2.msra.mxu0 %v105
    %143 = vmatprep.subr.mxu0 0.0
    %144 = vmatpush2.msra.mxu0 %v104
    %145 = vmatprep.subr.mxu0 0.0
    %146 = vmatpush2.msra.mxu0 %v103
    %147 = vmatprep.subr.mxu0 0.0
    %148 = vmatpush2.msra.mxu0 %v102
    %149 = vmatprep.subr.mxu0 0.0
    %150 = vmatpush2.msra.mxu0 %v101
    %151 = vmatprep.subr.mxu0 0.0
    %152 = vmatpush2.msra.mxu0 %v100
    %153 = vmatprep.subr.mxu0 0.0
    %154 = vmatpush2.msra.mxu0 %v99
    %155 = vmatprep.subr.mxu0 0.0
    %156 = vmatpush2.msra.mxu0 %v98
    %157 = vmatprep.subr.mxu0 0.0
    %158 = vmatpush2.msra.mxu0 %v97
    %159 = vmatprep.subr.mxu0 0.0
    %160 = vmatpush2.msra.mxu0 %v96
    %161 = vmatprep.subr.mxu0 0.0
    %162 = vmatpush2.msra.mxu0 %v95
    %163 = vmatprep.subr.mxu0 0.0
    %164 = vmatpush2.msra.mxu0 %v94
    %165 = vmatprep.subr.mxu0 0.0
    %166 = vmatpush2.msra.mxu0 %v93
    %167 = vmatprep.subr.mxu0 0.0
    %168 = vmatpush2.msra.mxu0 %v92
    %169 = vmatprep.subr.mxu0 0.0
    %170 = vmatpush2.msra.mxu0 %v91
    %171 = vmatprep.mubr.f32.mxu0 %v44
    %172 = vmatmul.mubr.f32.gmra.mxu0 %v43
    %v173 = vpop.f32.mrf.mxu0
    %v174 = vadd.f32 0.0, %v173
    %v175 = vpop.f32.mrf.mxu0
    %176 = vmatprep.mubr.f32.mxu0 %v46
    %177 = vmatmul.mubr.f32.gmra.mxu0 %v45
    %v178 = vpop.f32.mrf.mxu0
    %v179 = vadd.f32 0.0, %v178
    %v180 = vpop.f32.mrf.mxu0
    %181 = vmatprep.mubr.f32.mxu0 %v48
    %182 = vmatmul.mubr.f32.gmra.mxu0 %v47
    %v183 = vpop.f32.mrf.mxu0
    %v184 = vadd.f32 0.0, %v183
    %v185 = vpop.f32.mrf.mxu0
    %186 = vmatprep.mubr.f32.mxu0 %v50
    %187 = vmatmul.mubr.f32.gmra.mxu0 %v49
    %v188 = vpop.f32.mrf.mxu0
    %v189 = vadd.f32 0.0, %v188
    %v190 = vpop.f32.mrf.mxu0
    %191 = vmatprep.mubr.f32.mxu0 %v52
    %192 = vmatmul.mubr.f32.gmra.mxu0 %v51
    %v193 = vpop.f32.mrf.mxu0
    %v194 = vadd.f32 0.0, %v193
    %v195 = vpop.f32.mrf.mxu0
    %196 = vmatprep.mubr.f32.mxu0 %v54
    %197 = vmatmul.mubr.f32.gmra.mxu0 %v53
    %v198 = vpop.f32.mrf.mxu0
    %v199 = vadd.f32 0.0, %v198
    %v200 = vpop.f32.mrf.mxu0
    %201 = vmatprep.mubr.f32.mxu0 %v56
    %202 = vmatmul.mubr.f32.gmra.mxu0 %v55
    %v203 = vpop.f32.mrf.mxu0
    %v204 = vadd.f32 0.0, %v203
    %v205 = vpop.f32.mrf.mxu0
    %206 = vmatprep.mubr.f32.mxu0 %v58
    %207 = vmatmul.mubr.f32.gmra.mxu0 %v57
    %v208 = vpop.f32.mrf.mxu0
    %v209 = vadd.f32 0.0, %v208
    %v210 = vpop.f32.mrf.mxu0
    %211 = vmatprep.mubr.f32.mxu0 %v60
    %212 = vmatmul.mubr.f32.gmra.mxu0 %v59
    %v213 = vpop.f32.mrf.mxu0
    %v214 = vadd.f32 0.0, %v213
    %v215 = vpop.f32.mrf.mxu0
    %216 = vmatprep.mubr.f32.mxu0 %v62
    %217 = vmatmul.mubr.f32.gmra.mxu0 %v61
    %v218 = vpop.f32.mrf.mxu0
    %v219 = vadd.f32 0.0, %v218
    %v220 = vpop.f32.mrf.mxu0
    %221 = vmatprep.mubr.f32.mxu0 %v64
    %222 = vmatmul.mubr.f32.gmra.mxu0 %v63
    %v223 = vpop.f32.mrf.mxu0
    %v224 = vadd.f32 0.0, %v223
    %v225 = vpop.f32.mrf.mxu0
    %226 = vmatprep.mubr.f32.mxu0 %v66
    %227 = vmatmul.mubr.f32.gmra.mxu0 %v65
    %v228 = vpop.f32.mrf.mxu0
    %v229 = vadd.f32 0.0, %v228
    %v230 = vpop.f32.mrf.mxu0
    %231 = vmatprep.mubr.f32.mxu0 %v68
    %232 = vmatmul.mubr.f32.gmra.mxu0 %v67
    %v233 = vpop.f32.mrf.mxu0
    %v234 = vadd.f32 0.0, %v233
    %v235 = vpop.f32.mrf.mxu0
    %236 = vmatprep.mubr.f32.mxu0 %v70
    %237 = vmatmul.mubr.f32.gmra.mxu0 %v69
    %v238 = vpop.f32.mrf.mxu0
    %v239 = vadd.f32 0.0, %v238
    %v240 = vpop.f32.mrf.mxu0
    %241 = vmatprep.mubr.f32.mxu0 %v72
    %242 = vmatmul.mubr.f32.gmra.mxu0 %v71
    %v243 = vpop.f32.mrf.mxu0
    %v244 = vadd.f32 0.0, %v243
    %v245 = vpop.f32.mrf.mxu0
    %246 = vmatprep.mubr.f32.mxu0 %v74
    %247 = vmatmul.mubr.f32.gmra.mxu0 %v73
    %v248 = vpop.f32.mrf.mxu0
    %v249 = vadd.f32 0.0, %v248
    %v250 = vpop.f32.mrf.mxu0
    %251 = vdwg.mxu0
    %v252 = vld [vmem:[%s2] sm:$0x1]
    %v254 = vlaneseq
    %v255 = vshrl.u32 %v254, 7
    %v256 = vsub.s32 0, %v255
    %v257 = vrot.slane %v252, %v256
    %vm259 = vcmp.gt.f32.partialorder %v174, %v257
    %vm260 = vcmp.gt.f32.partialorder %v179, %v257
    %vm261 = vcmp.gt.f32.partialorder %v184, %v257
    %vm262 = vcmp.gt.f32.partialorder %v189, %v257
    %vm263 = vcmp.gt.f32.partialorder %v194, %v257
    %vm264 = vcmp.gt.f32.partialorder %v199, %v257
    %vm265 = vcmp.gt.f32.partialorder %v204, %v257
    %vm266 = vcmp.gt.f32.partialorder %v209, %v257
    %vm267 = vcmp.gt.f32.partialorder %v214, %v257
    %vm268 = vcmp.gt.f32.partialorder %v219, %v257
    %vm269 = vcmp.gt.f32.partialorder %v224, %v257
    %vm270 = vcmp.gt.f32.partialorder %v229, %v257
    %vm271 = vcmp.gt.f32.partialorder %v234, %v257
    %vm272 = vcmp.gt.f32.partialorder %v239, %v257
    %vm273 = vcmp.gt.f32.partialorder %v244, %v257
    %vm274 = vcmp.gt.f32.partialorder %v249, %v257
    %v275 = vsel %vm259, 1, 0
    %v276 = vsel %vm260, 1, 0
    %v277 = vsel %vm261, 1, 0
    %v278 = vsel %vm262, 1, 0
    %v279 = vsel %vm263, 1, 0
    %v280 = vsel %vm264, 1, 0
    %v281 = vsel %vm265, 1, 0
    %v282 = vsel %vm266, 1, 0
    %v283 = vsel %vm267, 1, 0
    %v284 = vsel %vm268, 1, 0
    %v285 = vsel %vm269, 1, 0
    %v286 = vsel %vm270, 1, 0
    %v287 = vsel %vm271, 1, 0
    %v288 = vsel %vm272, 1, 0
    %v289 = vsel %vm273, 1, 0
    %v290 = vsel %vm274, 1, 0
    %v291 = vcvt.s32.f32 %v275
    %v292 = vcvt.s32.f32 %v276
    %v293 = vcvt.s32.f32 %v277
    %v294 = vcvt.s32.f32 %v278
    %v295 = vcvt.s32.f32 %v279
    %v296 = vcvt.s32.f32 %v280
    %v297 = vcvt.s32.f32 %v281
    %v298 = vcvt.s32.f32 %v282
    %v299 = vcvt.s32.f32 %v283
    %v300 = vcvt.s32.f32 %v284
    %v301 = vcvt.s32.f32 %v285
    %v302 = vcvt.s32.f32 %v286
    %v303 = vcvt.s32.f32 %v287
    %v304 = vcvt.s32.f32 %v288
    %v305 = vcvt.s32.f32 %v289
    %v306 = vcvt.s32.f32 %v290
    %307 = vadd.xlane.f32.xlu0 %v291
    %v308 = vpop.xlane.xlu0 %307
    %309 = vadd.xlane.f32.xlu0 %v292
    %v310 = vpop.xlane.xlu0 %309
    %311 = vadd.xlane.f32.xlu0 %v293
    %v312 = vpop.xlane.xlu0 %311
    %313 = vadd.xlane.f32.xlu0 %v294
    %v314 = vpop.xlane.xlu0 %313
    %315 = vadd.xlane.f32.xlu0 %v295
    %v316 = vpop.xlane.xlu0 %315
    %317 = vadd.xlane.f32.xlu0 %v296
    %v318 = vpop.xlane.xlu0 %317
    %319 = vadd.xlane.f32.xlu0 %v297
    %v320 = vpop.xlane.xlu0 %319
    %321 = vadd.xlane.f32.xlu0 %v298
    %v322 = vpop.xlane.xlu0 %321
    %323 = vadd.xlane.f32.xlu0 %v299
    %v324 = vpop.xlane.xlu0 %323
    %325 = vadd.xlane.f32.xlu0 %v300
    %v326 = vpop.xlane.xlu0 %325
    %327 = vadd.xlane.f32.xlu0 %v301
    %v328 = vpop.xlane.xlu0 %327
    %329 = vadd.xlane.f32.xlu0 %v302
    %v330 = vpop.xlane.xlu0 %329
    %331 = vadd.xlane.f32.xlu0 %v303
    %v332 = vpop.xlane.xlu0 %331
    %333 = vadd.xlane.f32.xlu0 %v304
    %v334 = vpop.xlane.xlu0 %333
    %335 = vadd.xlane.f32.xlu0 %v305
    %v336 = vpop.xlane.xlu0 %335
    %337 = vadd.xlane.f32.xlu0 %v306
    %v338 = vpop.xlane.xlu0 %337
    %v339 = vmul.f32 %v308, 0.01
    %v340 = vmul.f32 %v310, 0.01
    %v341 = vmul.f32 %v312, 0.01
    %v342 = vmul.f32 %v314, 0.01
    %v343 = vmul.f32 %v316, 0.01
    %v344 = vmul.f32 %v318, 0.01
    %v345 = vmul.f32 %v320, 0.01
    %v346 = vmul.f32 %v322, 0.01
    %v347 = vmul.f32 %v324, 0.01
    %v348 = vmul.f32 %v326, 0.01
    %v349 = vmul.f32 %v328, 0.01
    %v350 = vmul.f32 %v330, 0.01
    %v351 = vmul.f32 %v332, 0.01
    %v352 = vmul.f32 %v334, 0.01
    %v353 = vmul.f32 %v336, 0.01
    %v354 = vmul.f32 %v338, 0.01
    %355 = vxpose.xlu0.b32.start [1/16] %v339, 128
    %356 = vxpose.xlu0.b32.cont [2/16] %v340, 128
    %357 = vxpose.xlu0.b32.cont [3/16] %v341, 128
    %358 = vxpose.xlu0.b32.cont [4/16] %v342, 128
    %359 = vxpose.xlu0.b32.cont [5/16] %v343, 128
    %360 = vxpose.xlu0.b32.cont [6/16] %v344, 128
    %361 = vxpose.xlu0.b32.cont [7/16] %v345, 128
    %362 = vxpose.xlu0.b32.cont [8/16] %v346, 128
    %363 = vxpose.xlu0.b32.cont [9/16] %v347, 128
    %364 = vxpose.xlu0.b32.cont [10/16] %v348, 128
    %365 = vxpose.xlu0.b32.cont [11/16] %v349, 128
    %366 = vxpose.xlu0.b32.cont [12/16] %v350, 128
    %367 = vxpose.xlu0.b32.cont [13/16] %v351, 128
    %368 = vxpose.xlu0.b32.cont [14/16] %v352, 128
    %369 = vxpose.xlu0.b32.cont [15/16] %v353, 128
    %370 = vxpose.xlu0.b32.end [16/16] %v354, 128
    %v371 = vpop.trf.xlu0
    %v372 = vpop.trf.xlu0
    %v373 = vpop.trf.xlu0
    %v374 = vpop.trf.xlu0
    %v375 = vpop.trf.xlu0
    %v376 = vpop.trf.xlu0
    %v377 = vpop.trf.xlu0
    %v378 = vpop.trf.xlu0
    %v379 = vpop.trf.xlu0
    %v380 = vpop.trf.xlu0
    %v381 = vpop.trf.xlu0
    %v382 = vpop.trf.xlu0
    %v383 = vpop.trf.xlu0
    %v384 = vpop.trf.xlu0
    %v385 = vpop.trf.xlu0
    %v386 = vpop.trf.xlu0
    %387 = vst [vmem:[#allocation7] sm:$0x1] %v371
    // Predicated region
    $region22: #{tpu_custom_call.1} parent=1 // pred_check
      _
    $region23: #{tpu_custom_call.1} parent=1 // pred_check_branch
      %389 = sbr.rel (0) target = $region25
    $region24: #{tpu_custom_call.1} parent=1 // pred_region
      %s391 = ssub.s32 16, 16
      %392 = vsyncadd [#allocation4], %s391
      %s394 = sshll.u32 [#allocation7], 4
      %s395 = int_to_ptr.vmem [resolvable:$true] %s394
      %397 = dma.vmem_to_hbm [thread:$0]  %s395, 16, %s3, [#allocation4]
    $region25: #{tpu_custom_call.1} parent=1 // pred_fallthru
      _
    // Predicated region
    $region26: #{tpu_custom_call.1} parent=1 // pred_check
      _
    $region27: #{tpu_custom_call.1} parent=1 // pred_check_branch
      %399 = sbr.rel (0) target = $region29
    $region28: #{tpu_custom_call.1} parent=1 // pred_region
      %400 = dma.done [#allocation4], 16
    $region29: #{tpu_custom_call.1} parent=1 // pred_fallthru
      _
    %401 = vsyncpa [#allocation3], 1
    %402 = vsyncpa [#allocation6], 1
    %403 = vsyncpa [#allocation4], 1

</llo_original>
